<compile_context>
chip_gen: v6e
topology: v6e:2x2x1
jax: 0.10.0
libtpu: 0.0.40
codegen_flags: <defaults>
</compile_context>

<pallas_src>
import functools

import numpy as np
import jax
import jax.numpy as jnp
from jax.experimental import pallas as pl
from jax.experimental.pallas import tpu as pltpu


# ----------------------------------------------------------------------------
# Interpolation matrices (static, built on host with numpy).
# ----------------------------------------------------------------------------
def _interp_matrix_np(out_size: int, in_size: int) -> np.ndarray:
    """1-D bilinear (align_corners=True) interpolation matrix, shape (out, in)."""
    if out_size == 1:
        src = np.zeros((1,), dtype=np.float64)
    else:
        src = np.arange(out_size, dtype=np.float64) * (in_size - 1) / (out_size - 1)
    i0 = np.clip(np.floor(src).astype(np.int64), 0, in_size - 1)
    i1 = np.clip(i0 + 1, 0, in_size - 1)
    w1 = (src - i0).astype(np.float32)
    w0 = (1.0 - w1).astype(np.float32)
    m = np.zeros((out_size, in_size), dtype=np.float32)
    m[np.arange(out_size), i0] += w0
    m[np.arange(out_size), i1] += w1
    return m


# ----------------------------------------------------------------------------
# VMEM-aware tile sizing.
# ----------------------------------------------------------------------------
def _round_up(v: int, m: int) -> int:
    return (v + m - 1) // m * m


def _vmem_capacity_bytes() -> int:
    try:
        return int(pltpu.get_tpu_info().vmem_capacity_bytes)
    except Exception:
        return 64 * 1024 * 1024  # conservative default (v7x per-TC VMEM)


def _vmem_limit_bytes() -> int:
    # Explicit scoped-VMEM limit, leaving headroom for Mosaic-internal scratch.
    return min(3 * _vmem_capacity_bytes() // 4, 96 * 1024 * 1024)


def _pick_channel_tile(c, h_in, w_in, h_out, w_out, dtype) -> int:
    """Largest divisor of C whose per-step VMEM footprint fits the budget."""
    budget = max(_vmem_capacity_bytes() // 3, 2 * 1024 * 1024)
    isz = jnp.dtype(dtype).itemsize

    def step_bytes(ct):
        # (8,128)-padded x/out blocks, double-buffered by the Pallas pipeline,
        # plus the f32 intermediate of the two-stage contraction.
        x_b = ct * _round_up(h_in, 8) * _round_up(w_in, 128) * isz
        o_b = ct * _round_up(h_out, 8) * _round_up(w_out, 128) * isz
        t_b = ct * max(h_out * _round_up(w_in, 128), h_in * _round_up(w_out, 128)) * 4
        mats = (_round_up(h_out, 8) * _round_up(h_in, 128)
                + _round_up(w_in, 8) * _round_up(w_out, 128)) * 4
        return 2 * (x_b + o_b) + t_b + mats

    best = 1
    for ct in range(1, c + 1):
        if c % ct == 0 and step_bytes(ct) <= budget:
            best = ct
    return best


# ----------------------------------------------------------------------------
# Kernel.
# ----------------------------------------------------------------------------
def _make_upsample_kernel(c_tile, h_in, w_in, h_out, w_out, compute_dtype):
    # Pick the contraction order that minimises the f32 intermediate
    # (H-first intermediate: C*H_out*W_in ; W-first intermediate: C*H_in*W_out).
    h_first = h_out * w_in <= h_in * w_out

    def kernel(ah_ref, awt_ref, x_ref, out_ref):
        # ah : (H_out, H_in)      awt : (W_in, W_out)        (compute dtype)
        # x  : (1, c_tile, H_in, W_in)   out: (1, c_tile, H_out, W_out)
        x = x_ref[0]                       # keep native dtype (bf16 stays bf16)
        ah = ah_ref[...]
        awt = awt_ref[...]

        if h_first:
            # H contraction: one dot_general contracting H_in against a_h; the
            # free dims (c, w_in) stay folded inside the dot_general (no
            # per-channel batch of tiny matmuls).
            r = jnp.einsum("oh,chw->cow", ah, x,
                           preferred_element_type=jnp.float32)   # (c, H_out, W_in)
            r = r.astype(compute_dtype)
            # W contraction: fold (c, H_out) into the MXU M dimension -> one big
            # 2-D matmul with f32 accumulation.
            up = jnp.dot(r.reshape(c_tile * h_out, w_in), awt,
                         preferred_element_type=jnp.float32)     # (c*H_out, W_out)
            up = up.reshape(c_tile, h_out, w_out)
        else:
            # W contraction first: fold (c, H_in) into the MXU M dimension.
            t = jnp.dot(x.reshape(c_tile * h_in, w_in), awt,
                        preferred_element_type=jnp.float32)      # (c*H_in, W_out)
            t = t.reshape(c_tile, h_in, w_out).astype(compute_dtype)
            # H contraction: one dot_general contracting H_in against a_h.
            up = jnp.einsum("oh,chw->cow", ah, t,
                            preferred_element_type=jnp.float32)  # (c, H_out, W_out)

        out_ref[0] = up.astype(out_ref.dtype)

    return kernel


def _upsample_bilinear_pallas(x: jnp.ndarray, h_out: int, w_out: int) -> jnp.ndarray:
    n, c, h_in, w_in = x.shape
    compute_dtype = jnp.bfloat16 if x.dtype == jnp.bfloat16 else jnp.float32

    a_h = jnp.asarray(_interp_matrix_np(h_out, h_in), dtype=compute_dtype)     # (H_out, H_in)
    a_w_t = jnp.asarray(_interp_matrix_np(w_out, w_in).T, dtype=compute_dtype)  # (W_in, W_out)

    c_tile = _pick_channel_tile(c, h_in, w_in, h_out, w_out, x.dtype)
    grid = (n, c // c_tile)

    kernel = _make_upsample_kernel(c_tile, h_in, w_in, h_out, w_out, compute_dtype)

    return pl.pallas_call(
        kernel,
        out_shape=jax.ShapeDtypeStruct((n, c, h_out, w_out), x.dtype),
        grid_spec=pltpu.PrefetchScalarGridSpec(
            num_scalar_prefetch=0,
            grid=grid,
            in_specs=[
                # Interp matrices: constant block index -> fetched once, stay resident.
                pl.BlockSpec((h_out, h_in), lambda b, cb: (0, 0)),
                pl.BlockSpec((w_in, w_out), lambda b, cb: (0, 0)),
                # x: one image, one channel tile per grid step (last two dims full).
                pl.BlockSpec((1, c_tile, h_in, w_in), lambda b, cb: (b, cb, 0, 0)),
            ],
            out_specs=pl.BlockSpec((1, c_tile, h_out, w_out),
                                   lambda b, cb: (b, cb, 0, 0)),
        ),
        compiler_params=pltpu.CompilerParams(
            dimension_semantics=("parallel", "parallel"),
            vmem_limit_bytes=_vmem_limit_bytes(),
        ),
    )(a_h, a_w_t, x)


# ----------------------------------------------------------------------------
# Public wrapper: TransitionUp.forward
# ----------------------------------------------------------------------------
@functools.partial(jax.jit, static_argnames=("concat",))
def transition_up(x: jnp.ndarray, skip: jnp.ndarray, concat: bool = True) -> jnp.ndarray:
    """Pallas implementation of TransitionUp.forward (NCHW)."""
    h_out, w_out = skip.shape[2], skip.shape[3]
    up = _upsample_bilinear_pallas(x, h_out, w_out)
    if concat:
        # The skip pass-through is a pure copy: leave it to XLA's concatenate so
        # the Pallas pipeline only moves bytes that need compute.
        return jnp.concatenate([up, skip], axis=1)
    return up


# ----------------------------------------------------------------------------
# Pure-JAX reference + self test.
# ----------------------------------------------------------------------------
def _reference(x, skip, concat=True):
    n, c, h_in, w_in = x.shape
    h_out, w_out = skip.shape[2], skip.shape[3]
    a_h = jnp.asarray(_interp_matrix_np(h_out, h_in), dtype=jnp.float32)
    a_w = jnp.asarray(_interp_matrix_np(w_out, w_in), dtype=jnp.float32)
    up = jnp.einsum("oh,nchw,qw->ncoq", a_h, x.astype(jnp.float32), a_w)
    up = up.astype(x.dtype)
    if concat:
        return jnp.concatenate([up, skip], axis=1)
    return up


if __name__ == "__main__":
    key = jax.random.PRNGKey(0)
    kx, ks = jax.random.split(key)
    # x is the lower-resolution feature map; skip is the higher-resolution one.
    x = jax.random.normal(kx, (2, 8, 8, 8), dtype=jnp.float32)
    skip = jax.random.normal(ks, (2, 8, 16, 16), dtype=jnp.float32)

    out = jax.block_until_ready(transition_up(x, skip, concat=True))
    assert out.shape == (2, 16, 16, 16), out.shape
    ref = _reference(x, skip, concat=True)
    assert jnp.allclose(out, ref, atol=1e-3, rtol=1e-3), float(jnp.max(jnp.abs(out - ref)))

    out_nc = jax.block_until_ready(transition_up(x, skip, concat=False))
    assert out_nc.shape == (2, 8, 16, 16), out_nc.shape
    ref_nc = _reference(x, skip, concat=False)
    assert jnp.allclose(out_nc, ref_nc, atol=1e-3, rtol=1e-3)

    print("KERNEL_OK")
</pallas_src>

<mosaic_0001>
module attributes {stable_mosaic.version = 11 : i64} {
  func.func @kernel(%arg0: i32, %arg1: i32, %arg2: memref<16x8xf32, #tpu.memory_space<vmem>>, %arg3: memref<8x16xf32, #tpu.memory_space<vmem>>, %arg4: memref<1x8x8x8xf32, #tpu.memory_space<vmem>>, %arg5: memref<1x8x16x16xf32, #tpu.memory_space<vmem>>) attributes {dimension_semantics = [#tpu.dimension_semantics<parallel>, #tpu.dimension_semantics<parallel>], iteration_bounds = array<i64: 2, 1>, scalar_prefetch = 0 : i64, scratch_operands = 0 : i64, tpu.core_type = #tpu.core_type<tc>, window_params = [{pipeline_mode = #tpu.pipeline_mode<synchronous>, transform_indices = @transform_0, window_bounds = array<i64: 16, 8>}, {pipeline_mode = #tpu.pipeline_mode<synchronous>, transform_indices = @transform_1, window_bounds = array<i64: 8, 16>}, {transform_indices = @transform_2, window_bounds = array<i64: 1, 8, 8, 8>}, {transform_indices = @transform_3, window_bounds = array<i64: 1, 8, 16, 16>}]} {
    %c0 = arith.constant 0 : index
    %c0_0 = arith.constant 0 : index
    %c0_1 = arith.constant 0 : index
    %c0_2 = arith.constant 0 : index
    %0 = vector.load %arg4[%c0, %c0_0, %c0_1, %c0_2] : memref<1x8x8x8xf32, #tpu.memory_space<vmem>>, vector<1x8x8x8xf32>
    %1 = vector.shape_cast %0 : vector<1x8x8x8xf32> to vector<8x8x8xf32>
    %c0_3 = arith.constant 0 : index
    %c0_4 = arith.constant 0 : index
    %2 = vector.load %arg2[%c0_3, %c0_4] : memref<16x8xf32, #tpu.memory_space<vmem>>, vector<16x8xf32>
    %c0_5 = arith.constant 0 : index
    %c0_6 = arith.constant 0 : index
    %3 = vector.load %arg3[%c0_5, %c0_6] : memref<8x16xf32, #tpu.memory_space<vmem>>, vector<8x16xf32>
    "tpu.trace_start"() <{level = 10 : i32, message = "oh,chw->cow"}> : () -> ()
    %cst = arith.constant dense<0.000000e+00> : vector<8x8x16xf32>
    %4 = tpu.matmul %1, %2, %cst {dimension_numbers = #tpu.dot_dimension_numbers<[1], [1], [0, 2], [0], [0, 0, 0, 2, 1, 0], [], []>} : vector<8x8x8xf32>, vector<16x8xf32>, vector<8x8x16xf32> -> vector<8x8x16xf32>
    %5 = tpu.transpose %4, [0, 2, 1] : vector<8x8x16xf32> -> vector<8x16x8xf32>
    "tpu.trace_stop"() : () -> ()
    %6 = vector.shape_cast %5 : vector<8x16x8xf32> to vector<128x8xf32>
    %cst_7 = arith.constant dense<0.000000e+00> : vector<128x16xf32>
    %7 = tpu.matmul %6, %3, %cst_7 {dimension_numbers = #tpu.dot_dimension_numbers<[1], [0], [0], [1], [0, 0, 1, 1], [], []>} : vector<128x8xf32>, vector<8x16xf32>, vector<128x16xf32> -> vector<128x16xf32>
    %8 = vector.shape_cast %7 : vector<128x16xf32> to vector<8x16x16xf32>
    %c0_8 = arith.constant 0 : index
    %c0_9 = arith.constant 0 : index
    %c0_10 = arith.constant 0 : index
    %c0_11 = arith.constant 0 : index
    %9 = vector.load %arg5[%c0_8, %c0_9, %c0_10, %c0_11] : memref<1x8x16x16xf32, #tpu.memory_space<vmem>>, vector<1x8x16x16xf32>
    %10 = vector.shape_cast %9 : vector<1x8x16x16xf32> to vector<8x16x16xf32>
    %11 = vector.shape_cast %8 : vector<8x16x16xf32> to vector<1x8x16x16xf32>
    tpu.vector_store %arg5[%c0_8, %c0_9, %c0_10, %c0_11], %11 {strides = array<i32>} : memref<1x8x16x16xf32, #tpu.memory_space<vmem>>, vector<1x8x16x16xf32>,
    return
  }
  func.func @transform_0(%arg0: i32, %arg1: i32) -> (i32, i32) {
    %c0_i32 = arith.constant 0 : i32
    %c0_i32_0 = arith.constant 0 : i32
    %c0_i32_1 = arith.constant 0 : i32
    return %c0_i32, %c0_i32_0 : i32, i32
  }
  func.func @transform_1(%arg0: i32, %arg1: i32) -> (i32, i32) {
    %c0_i32 = arith.constant 0 : i32
    %c0_i32_0 = arith.constant 0 : i32
    %c0_i32_1 = arith.constant 0 : i32
    return %c0_i32, %c0_i32_0 : i32, i32
  }
  func.func @transform_2(%arg0: i32, %arg1: i32) -> (i32, i32, i32, i32) {
    %c0_i32 = arith.constant 0 : i32
    %c0_i32_0 = arith.constant 0 : i32
    %c0_i32_1 = arith.constant 0 : i32
    return %arg0, %arg1, %c0_i32, %c0_i32_0 : i32, i32, i32, i32
  }
  func.func @transform_3(%arg0: i32, %arg1: i32) -> (i32, i32, i32, i32) {
    %c0_i32 = arith.constant 0 : i32
    %c0_i32_0 = arith.constant 0 : i32
    %c0_i32_1 = arith.constant 0 : i32
    return %arg0, %arg1, %c0_i32, %c0_i32_0 : i32, i32, i32, i32
  }
}

</mosaic_0001>

<llo_original>
// kernel: transition_up.1
$region0: #{transition_up.1}
  #allocation0 [shape = 'u32[]', space=smem, size = 0x4, offset = 0x4, fixed_abs, tag = 'smem constant byte address 0x4 - core index']
  #allocation1 [shape = 'u32[144,128]{1,0:T(1,128)}', space=vmem, size = 0x12000, scoped, tag = 'internal scratch']
  %s0 = inlined_call_operand.hbm [shape: f32[16,8], index: 0, kind: input, shape index: {}]
  %s1 = inlined_call_operand.hbm [shape: f32[8,16], index: 1, kind: input, shape index: {}]
  %s2 = inlined_call_operand.hbm [shape: f32[2,8,8,8], index: 2, kind: input, shape index: {}]
  %s3 = inlined_call_operand.vmem [shape: f32[2,8,16,16], index: 3, kind: output, shape index: {}]
  %s4 = sld [smem:[#allocation0]]
  $region57: #{transition_up.1} parent=0
    _
  %s6 = ssub.s32 1, %s4
  %s7 = scalar_select 0, %s6, %s4
  $region1: #{transition_up.1} parent=0
    #allocation2 [shape = 'u8[8192]{0}', space=vmem, size = 0x2000, scoped, tag = 'input window, operand 0, single buffered']
    #allocation3 [shape = 's32[2]{0}', space=sflag, size = 0x8, scoped, tag = 'scoped memory for transition_up.1']
    #allocation4 [shape = 'u8[4096]{0}', space=vmem, size = 0x1000, scoped, tag = 'input window, operand 1, single buffered']
    #allocation5 [shape = 's32[1]{0}', space=sflag, size = 0x4, scoped, tag = 'scoped memory for transition_up.1']
    #allocation6 [shape = 'u8[65536]{0}', space=vmem, size = 0x10000, scoped, tag = 'input window, operand 2']
    %8 = vsyncpa [#allocation3], 0
    %9 = vsyncpa [#allocation5], 0
    loop: start=0, step=1, limit=4
    $region2: #{transition_up.1} parent=1 // loop_pre_header
      _
    $region3: #{transition_up.1} parent=1 // loop_header
      %s11 = sphi 0, %s15
      %p12 = scmp.ge.s32.totalorder %s11, 4
      %s18 = sphi 0, %s30
      %s19 = sphi 0, %s26
      %s20 = sphi 0, %s18
      %s21 = sphi 0, %s19
      %s22 = sphi 0, %s20
      %s23 = sphi 0, %s21
      %s31 = sphi 0, %s31
      %s33 = sphi 0, %s31
      %s34 = sphi 0, %s33
      %s48 = sphi 0, %s34
      %s52 = sphi 0, %s52
      %s54 = sphi 0, %s52
      %s55 = sphi 0, %s54
      %s69 = sphi 0, %s55
      %s77 = sphi 0, %s79
      %s80 = sphi 0, %s77
      %s81 = sphi 0, %s80
      %s97 = sphi 0, %s81
      %s105 = sphi 0, %s107
      %s108 = sphi 0, %s105
      %s109 = sphi 0, %s108
      %s125 = sphi 0, %s109
    $region4: #{transition_up.1} parent=1 // loop_header_branch
      %14 = sbr.rel (%p12) target = $region8
    $region5: #{transition_up.1} parent=1 // loop_body
      %s16 = ssub.s32 %s11, 1
      %s17 = ssub.s32 %s11, 2
      %s24 = sadd.s32 1, %s19
      %p25 = scmp.ge.s32.totalorder %s24, 1
      %s26 = scalar_select %p25, 0, %s24
      %s27 = sadd.s32 1, %s18
      %s28 = scalar_select %p25, %s27, %s18
      %p29 = scmp.ge.s32.totalorder %s28, 2
      %s30 = scalar_select %p29, 0, %s28
      %s32 = sadd.s32 %s31, 1
      %p35 = scmp.eq.s32.totalorder %s11, 1
      %p36 = scmp.ne.s32.totalorder %s31, %s33
      %p37 = scmp.eq.s32.totalorder %s11, 0
      %p38 = por %p36, %p37
      %p39 = scmp.ne.s32.totalorder %s31, %s33
      %p40 = scmp.eq.s32.totalorder %s16, 1
      %p41 = por %p39, %p40
      %p42 = scmp.ne.s32.totalorder %s33, %s34
      %p43 = scmp.eq.s32.totalorder %s16, 0
      %p44 = por %p42, %p43
      %p45 = scmp.ne.s32.totalorder %s33, %s34
      %p46 = scmp.eq.s32.totalorder %s17, 1
      %p47 = por %p45, %p46
      %p49 = scmp.ne.s32.totalorder %s34, %s48
      %p50 = scmp.eq.s32.totalorder %s17, 0
      %p51 = por %p49, %p50
      %s53 = sadd.s32 %s52, 1
      %p56 = scmp.eq.s32.totalorder %s11, 1
      %p57 = scmp.ne.s32.totalorder %s52, %s54
      %p58 = scmp.eq.s32.totalorder %s11, 0
      %p59 = por %p57, %p58
      %p60 = scmp.ne.s32.totalorder %s52, %s54
      %p61 = scmp.eq.s32.totalorder %s16, 1
      %p62 = por %p60, %p61
      %p63 = scmp.ne.s32.totalorder %s54, %s55
      %p64 = scmp.eq.s32.totalorder %s16, 0
      %p65 = por %p63, %p64
      %p66 = scmp.ne.s32.totalorder %s54, %s55
      %p67 = scmp.eq.s32.totalorder %s17, 1
      %p68 = por %p66, %p67
      %p70 = scmp.ne.s32.totalorder %s55, %s69
      %p71 = scmp.eq.s32.totalorder %s17, 0
      %p72 = por %p70, %p71
      %s73 = ssub.s32 %s18, %s30
      %s74 = ssub.s32 %s19, %s26
      %s75 = sor.u32 %s73, %s74
      %p76 = scmp.eq.s32.totalorder %s75, 0
      %s78 = sadd.s32 %s77, 1
      %s79 = scalar_select %p76, %s77, %s78
      %p82 = pneg %p76
      %p83 = scmp.eq.s32.totalorder %s11, 1
      %p84 = por %p82, %p83
      %p85 = scmp.ne.s32.totalorder %s77, %s80
      %p86 = scmp.eq.s32.totalorder %s11, 0
      %p87 = por %p85, %p86
      %p88 = scmp.ne.s32.totalorder %s77, %s80
      %p89 = scmp.eq.s32.totalorder %s16, 1
      %p90 = por %p88, %p89
      %p91 = scmp.ne.s32.totalorder %s80, %s81
      %p92 = scmp.eq.s32.totalorder %s16, 0
      %p93 = por %p91, %p92
      %p94 = scmp.ne.s32.totalorder %s80, %s81
      %p95 = scmp.eq.s32.totalorder %s17, 1
      %p96 = por %p94, %p95
      %p98 = scmp.ne.s32.totalorder %s81, %s97
      %p99 = scmp.eq.s32.totalorder %s17, 0
      %p100 = por %p98, %p99
      %s101 = ssub.s32 %s18, %s30
      %s102 = ssub.s32 %s19, %s26
      %s103 = sor.u32 %s101, %s102
      %p104 = scmp.eq.s32.totalorder %s103, 0
      %s106 = sadd.s32 %s105, 1
      %s107 = scalar_select %p104, %s105, %s106
      %p110 = pneg %p104
      %p111 = scmp.eq.s32.totalorder %s11, 1
      %p112 = por %p110, %p111
      %p113 = scmp.ne.s32.totalorder %s105, %s108
      %p114 = scmp.eq.s32.totalorder %s11, 0
      %p115 = por %p113, %p114
      %p116 = scmp.ne.s32.totalorder %s105, %s108
      %p117 = scmp.eq.s32.totalorder %s16, 1
      %p118 = por %p116, %p117
      %p119 = scmp.ne.s32.totalorder %s108, %s109
      %p120 = scmp.eq.s32.totalorder %s16, 0
      %p121 = por %p119, %p120
      %p122 = scmp.ne.s32.totalorder %s108, %s109
      %p123 = scmp.eq.s32.totalorder %s17, 1
      %p124 = por %p122, %p123
      %p126 = scmp.ne.s32.totalorder %s109, %s125
      %p127 = scmp.eq.s32.totalorder %s17, 0
      %p128 = por %p126, %p127
      %p129 = scmp.le.s32.totalorder 1, %s11
      %p130 = scmp.lt.s32.totalorder %s11, 3
      %p131 = pnand %p129, %p130
      %p132 = pneg %p131
      // Predicated region
      $region9: #{transition_up.1} parent=5 // pred_check
        _
      $region10: #{transition_up.1} parent=5 // pred_check_branch
        %134 = sbr.rel (%p131) target = $region12
      $region11: #{transition_up.1} parent=5 // pred_region
        %s135 = ssub.s32 %s11, 1
        // Predicated region
        $region13: #{transition_up.1} parent=11 // pred_check
          %p136 = pneg %p44
        $region14: #{transition_up.1} parent=11 // pred_check_branch
          %138 = sbr.rel (%p136) target = $region16
        $region15: #{transition_up.1} parent=11 // pred_region
          %s140 = ssub.s32 256, 256
          %141 = vsyncadd [#allocation3], %s140
          %s142 = sshll.u32 [#allocation2], 4
          %s143 = int_to_ptr.vmem [resolvable:$true] %s142
          %148 = dma.hbm_to_vmem [thread:$0]  %s0, 256, %s143, [#allocation3], 128, 128, 8
        $region16: #{transition_up.1} parent=11 // pred_fallthru
          _
        // Predicated region
        $region17: #{transition_up.1} parent=11 // pred_check
          %p149 = pneg %p65
        $region18: #{transition_up.1} parent=11 // pred_check_branch
          %151 = sbr.rel (%p149) target = $region20
        $region19: #{transition_up.1} parent=11 // pred_region
          %s153 = ssub.s32 128, 128
          %154 = vsyncadd [#allocation5], %s153
          %s156 = sshll.u32 [#allocation4], 4
          %s157 = int_to_ptr.vmem [resolvable:$true] %s156
          %159 = dma.hbm_to_vmem [thread:$0]  %s1, 128, %s157, [#allocation5]
        $region20: #{transition_up.1} parent=11 // pred_fallthru
          _
      $region12: #{transition_up.1} parent=5 // pred_fallthru
        _
      %p160 = scmp.lt.s32.totalorder %s11, 2
      // Predicated region
      $region21: #{transition_up.1} parent=5 // pred_check
        %p161 = pneg %p160
      $region22: #{transition_up.1} parent=5 // pred_check_branch
        %163 = sbr.rel (%p161) target = $region24
      $region23: #{transition_up.1} parent=5 // pred_region
        // Predicated region
        $region25: #{transition_up.1} parent=23 // pred_check
          %p164 = pneg %p87
        $region26: #{transition_up.1} parent=23 // pred_check_branch
          %166 = sbr.rel (%p164) target = $region28
        $region27: #{transition_up.1} parent=23 // pred_region
          %s167 = sand.u32 %s11, 1
          %s168 = scalar_lea.sflag [#allocation3], %s167
          %s169 = sand.u32 %s77, 1
          %s170 = smul.addr %s169, 64
          %s171 = scalar_lea.vmem [#allocation6], %s170
          %s172 = smul.u32 8, %s19
          %s174 = ssub.s32 1024, 1024
          %175 = vsyncadd %s168, %s174
          %s176 = smul.addr %s18, 8
          %s177 = sadd.s32 %s172, %s176
          %s178 = smul.addr %s177, 128
          %s179 = scalar_lea.hbm %s2, %s178
          %s180 = sshll.u32 %s171, 4
          %s181 = int_to_ptr.vmem [resolvable:$true] %s180
          %186 = dma.hbm_to_vmem [thread:$0]  %s179, 1024, %s181, %s168, 128, 128, 8
        $region28: #{transition_up.1} parent=23 // pred_fallthru
          _
      $region24: #{transition_up.1} parent=5 // pred_fallthru
        _
      %p187 = scmp.le.s32.totalorder 1, %s11
      %p188 = scmp.lt.s32.totalorder %s11, 3
      %p189 = pnand %p187, %p188
      %p190 = pneg %p189
      // Predicated region
      $region29: #{transition_up.1} parent=5 // pred_check
        _
      $region30: #{transition_up.1} parent=5 // pred_check_branch
        %192 = sbr.rel (%p189) target = $region32
      $region31: #{transition_up.1} parent=5 // pred_region
        %s193 = ssub.s32 %s11, 1
        // Predicated region
        $region33: #{transition_up.1} parent=31 // pred_check
          %p194 = pneg %p44
        $region34: #{transition_up.1} parent=31 // pred_check_branch
          %196 = sbr.rel (%p194) target = $region36
        $region35: #{transition_up.1} parent=31 // pred_region
          %197 = dma.done [#allocation3], 256
        $region36: #{transition_up.1} parent=31 // pred_fallthru
          _
        // Predicated region
        $region37: #{transition_up.1} parent=31 // pred_check
          %p198 = pneg %p65
        $region38: #{transition_up.1} parent=31 // pred_check_branch
          %200 = sbr.rel (%p198) target = $region40
        $region39: #{transition_up.1} parent=31 // pred_region
          %201 = dma.done [#allocation5], 128
        $region40: #{transition_up.1} parent=31 // pred_fallthru
          _
        %s202 = sand.u32 %s16, 1
        %s203 = scalar_lea.sflag [#allocation3], %s202
        %s204 = sand.u32 %s80, 1
        %s205 = smul.addr %s204, 64
        %s206 = scalar_lea.vmem [#allocation6], %s205
        // Predicated region
        $region41: #{transition_up.1} parent=31 // pred_check
          %p207 = pneg %p93
        $region42: #{transition_up.1} parent=31 // pred_check_branch
          %209 = sbr.rel (%p207) target = $region44
        $region43: #{transition_up.1} parent=31 // pred_region
          %210 = dma.done %s203, 1024
        $region44: #{transition_up.1} parent=31 // pred_fallthru
          _
        %p211 = pneg %p44
        %p212 = pneg %p41
        %p213 = pneg %p65
        %p214 = pneg %p62
        %s215 = sand.u32 %s16, 1
        %s216 = scalar_lea.sflag [#allocation3], %s215
        %s217 = sand.u32 %s80, 1
        %s218 = smul.addr %s217, 64
        %s219 = scalar_lea.vmem [#allocation6], %s218
        %p220 = pneg %p93
        %p221 = pneg %p90
        %p222 = pneg %p121
        %p223 = pneg %p118
        %s224 = smul.u32 8, %s21
        %p225 = scmp.lt.s32.totalorder %s20, 1
        %s226 = scalar_select %p225, %s20, 1
        %p227 = scmp.lt.s32.totalorder %s224, 7
        %s228 = scalar_select %p227, %s224, 7
        %s229 = smul.addr %s228, 2
        %s230 = smul.addr %s226, 16
        %s231 = sadd.s32 %s229, %s230
        %s232 = smul.addr %s231, 8
        %s233 = scalar_lea.vmem %s3, %s232
        %s234 = smul.u32 8, %s21
        %s235 = smul.u32 8, %s21
        %p236 = scmp.lt.s32.totalorder %s20, 1
        %s237 = scalar_select %p236, %s20, 1
        %p238 = scmp.lt.s32.totalorder %s235, 7
        %s239 = scalar_select %p238, %s235, 7
        %s240 = smul.addr %s239, 2
        %s241 = smul.addr %s237, 16
        %s242 = sadd.s32 %s240, %s241
        %s243 = smul.addr %s242, 8
        %s244 = scalar_lea.vmem %s3, %s243
        %s245 = smul.u32 8, %s21
        %v246 = vld [vmem:[%s206] sm:$0xff]
        %v247 = vld [vmem:[%s206 + $0x8] sm:$0xff]
        %v248 = vld [vmem:[%s206 + $0x10] sm:$0xff]
        %v249 = vld [vmem:[%s206 + $0x18] sm:$0xff]
        %v250 = vld [vmem:[%s206 + $0x20] sm:$0xff]
        %v251 = vld [vmem:[%s206 + $0x28] sm:$0xff]
        %v252 = vld [vmem:[%s206 + $0x30] sm:$0xff]
        %v253 = vld [vmem:[%s206 + $0x38] sm:$0xff]
        %v254 = vld [vmem:[#allocation2] sm:$0xff]
        %v255 = vld [vmem:[#allocation2 + $0x8] sm:$0xff]
        %v256 = vld [vmem:[#allocation4] sm:$0xff]
        %257 = vxpose.xlu0.b32.start [1/16] %v246, 128
        %258 = vxpose.xlu0.b32.cont [2/16] 0.0, 128
        %259 = vxpose.xlu0.b32.cont [3/16] 0.0, 128
        %260 = vxpose.xlu0.b32.cont [4/16] 0.0, 128
        %261 = vxpose.xlu0.b32.cont [5/16] 0.0, 128
        %262 = vxpose.xlu0.b32.cont [6/16] 0.0, 128
        %263 = vxpose.xlu0.b32.cont [7/16] 0.0, 128
        %264 = vxpose.xlu0.b32.cont [8/16] 0.0, 128
        %265 = vxpose.xlu0.b32.cont [9/16] 0.0, 128
        %266 = vxpose.xlu0.b32.cont [10/16] 0.0, 128
        %267 = vxpose.xlu0.b32.cont [11/16] 0.0, 128
        %268 = vxpose.xlu0.b32.cont [12/16] 0.0, 128
        %269 = vxpose.xlu0.b32.cont [13/16] 0.0, 128
        %270 = vxpose.xlu0.b32.cont [14/16] 0.0, 128
        %271 = vxpose.xlu0.b32.cont [15/16] 0.0, 128
        %272 = vxpose.xlu0.b32.end [16/16] 0.0, 128
        %v273 = vpop.trf.xlu0
        %v274 = vpop.trf.xlu0
        %v275 = vpop.trf.xlu0
        %v276 = vpop.trf.xlu0
        %v277 = vpop.trf.xlu0
        %v278 = vpop.trf.xlu0
        %v279 = vpop.trf.xlu0
        %v280 = vpop.trf.xlu0
        %v281 = vpop.trf.xlu0
        %v282 = vpop.trf.xlu0
        %v283 = vpop.trf.xlu0
        %v284 = vpop.trf.xlu0
        %v285 = vpop.trf.xlu0
        %v286 = vpop.trf.xlu0
        %v287 = vpop.trf.xlu0
        %v288 = vpop.trf.xlu0
        %289 = vxpose.xlu0.b32.start [1/16] %v247, 128
        %290 = vxpose.xlu0.b32.cont [2/16] 0.0, 128
        %291 = vxpose.xlu0.b32.cont [3/16] 0.0, 128
        %292 = vxpose.xlu0.b32.cont [4/16] 0.0, 128
        %293 = vxpose.xlu0.b32.cont [5/16] 0.0, 128
        %294 = vxpose.xlu0.b32.cont [6/16] 0.0, 128
        %295 = vxpose.xlu0.b32.cont [7/16] 0.0, 128
        %296 = vxpose.xlu0.b32.cont [8/16] 0.0, 128
        %297 = vxpose.xlu0.b32.cont [9/16] 0.0, 128
        %298 = vxpose.xlu0.b32.cont [10/16] 0.0, 128
        %299 = vxpose.xlu0.b32.cont [11/16] 0.0, 128
        %300 = vxpose.xlu0.b32.cont [12/16] 0.0, 128
        %301 = vxpose.xlu0.b32.cont [13/16] 0.0, 128
        %302 = vxpose.xlu0.b32.cont [14/16] 0.0, 128
        %303 = vxpose.xlu0.b32.cont [15/16] 0.0, 128
        %304 = vxpose.xlu0.b32.end [16/16] 0.0, 128
        %v305 = vpop.trf.xlu0
        %v306 = vpop.trf.xlu0
        %v307 = vpop.trf.xlu0
        %v308 = vpop.trf.xlu0
        %v309 = vpop.trf.xlu0
        %v310 = vpop.trf.xlu0
        %v311 = vpop.trf.xlu0
        %v312 = vpop.trf.xlu0
        %v313 = vpop.trf.xlu0
        %v314 = vpop.trf.xlu0
        %v315 = vpop.trf.xlu0
        %v316 = vpop.trf.xlu0
        %v317 = vpop.trf.xlu0
        %v318 = vpop.trf.xlu0
        %v319 = vpop.trf.xlu0
        %v320 = vpop.trf.xlu0
        %321 = vxpose.xlu0.b32.start [1/16] %v248, 128
        %322 = vxpose.xlu0.b32.cont [2/16] 0.0, 128
        %323 = vxpose.xlu0.b32.cont [3/16] 0.0, 128
        %324 = vxpose.xlu0.b32.cont [4/16] 0.0, 128
        %325 = vxpose.xlu0.b32.cont [5/16] 0.0, 128
        %326 = vxpose.xlu0.b32.cont [6/16] 0.0, 128
        %327 = vxpose.xlu0.b32.cont [7/16] 0.0, 128
        %328 = vxpose.xlu0.b32.cont [8/16] 0.0, 128
        %329 = vxpose.xlu0.b32.cont [9/16] 0.0, 128
        %330 = vxpose.xlu0.b32.cont [10/16] 0.0, 128
        %331 = vxpose.xlu0.b32.cont [11/16] 0.0, 128
        %332 = vxpose.xlu0.b32.cont [12/16] 0.0, 128
        %333 = vxpose.xlu0.b32.cont [13/16] 0.0, 128
        %334 = vxpose.xlu0.b32.cont [14/16] 0.0, 128
        %335 = vxpose.xlu0.b32.cont [15/16] 0.0, 128
        %336 = vxpose.xlu0.b32.end [16/16] 0.0, 128
        %v337 = vpop.trf.xlu0
        %v338 = vpop.trf.xlu0
        %v339 = vpop.trf.xlu0
        %v340 = vpop.trf.xlu0
        %v341 = vpop.trf.xlu0
        %v342 = vpop.trf.xlu0
        %v343 = vpop.trf.xlu0
        %v344 = vpop.trf.xlu0
        %v345 = vpop.trf.xlu0
        %v346 = vpop.trf.xlu0
        %v347 = vpop.trf.xlu0
        %v348 = vpop.trf.xlu0
        %v349 = vpop.trf.xlu0
        %v350 = vpop.trf.xlu0
        %v351 = vpop.trf.xlu0
        %v352 = vpop.trf.xlu0
        %353 = vxpose.xlu0.b32.start [1/16] %v249, 128
        %354 = vxpose.xlu0.b32.cont [2/16] 0.0, 128
        %355 = vxpose.xlu0.b32.cont [3/16] 0.0, 128
        %356 = vxpose.xlu0.b32.cont [4/16] 0.0, 128
        %357 = vxpose.xlu0.b32.cont [5/16] 0.0, 128
        %358 = vxpose.xlu0.b32.cont [6/16] 0.0, 128
        %359 = vxpose.xlu0.b32.cont [7/16] 0.0, 128
        %360 = vxpose.xlu0.b32.cont [8/16] 0.0, 128
        %361 = vxpose.xlu0.b32.cont [9/16] 0.0, 128
        %362 = vxpose.xlu0.b32.cont [10/16] 0.0, 128
        %363 = vxpose.xlu0.b32.cont [11/16] 0.0, 128
        %364 = vxpose.xlu0.b32.cont [12/16] 0.0, 128
        %365 = vxpose.xlu0.b32.cont [13/16] 0.0, 128
        %366 = vxpose.xlu0.b32.cont [14/16] 0.0, 128
        %367 = vxpose.xlu0.b32.cont [15/16] 0.0, 128
        %368 = vxpose.xlu0.b32.end [16/16] 0.0, 128
        %v369 = vpop.trf.xlu0
        %v370 = vpop.trf.xlu0
        %v371 = vpop.trf.xlu0
        %v372 = vpop.trf.xlu0
        %v373 = vpop.trf.xlu0
        %v374 = vpop.trf.xlu0
        %v375 = vpop.trf.xlu0
        %v376 = vpop.trf.xlu0
        %v377 = vpop.trf.xlu0
        %v378 = vpop.trf.xlu0
        %v379 = vpop.trf.xlu0
        %v380 = vpop.trf.xlu0
        %v381 = vpop.trf.xlu0
        %v382 = vpop.trf.xlu0
        %v383 = vpop.trf.xlu0
        %v384 = vpop.trf.xlu0
        %385 = vxpose.xlu0.b32.start [1/16] %v250, 128
        %386 = vxpose.xlu0.b32.cont [2/16] 0.0, 128
        %387 = vxpose.xlu0.b32.cont [3/16] 0.0, 128
        %388 = vxpose.xlu0.b32.cont [4/16] 0.0, 128
        %389 = vxpose.xlu0.b32.cont [5/16] 0.0, 128
        %390 = vxpose.xlu0.b32.cont [6/16] 0.0, 128
        %391 = vxpose.xlu0.b32.cont [7/16] 0.0, 128
        %392 = vxpose.xlu0.b32.cont [8/16] 0.0, 128
        %393 = vxpose.xlu0.b32.cont [9/16] 0.0, 128
        %394 = vxpose.xlu0.b32.cont [10/16] 0.0, 128
        %395 = vxpose.xlu0.b32.cont [11/16] 0.0, 128
        %396 = vxpose.xlu0.b32.cont [12/16] 0.0, 128
        %397 = vxpose.xlu0.b32.cont [13/16] 0.0, 128
        %398 = vxpose.xlu0.b32.cont [14/16] 0.0, 128
        %399 = vxpose.xlu0.b32.cont [15/16] 0.0, 128
        %400 = vxpose.xlu0.b32.end [16/16] 0.0, 128
        %v401 = vpop.trf.xlu0
        %v402 = vpop.trf.xlu0
        %v403 = vpop.trf.xlu0
        %v404 = vpop.trf.xlu0
        %v405 = vpop.trf.xlu0
        %v406 = vpop.trf.xlu0
        %v407 = vpop.trf.xlu0
        %v408 = vpop.trf.xlu0
        %v409 = vpop.trf.xlu0
        %v410 = vpop.trf.xlu0
        %v411 = vpop.trf.xlu0
        %v412 = vpop.trf.xlu0
        %v413 = vpop.trf.xlu0
        %v414 = vpop.trf.xlu0
        %v415 = vpop.trf.xlu0
        %v416 = vpop.trf.xlu0
        %417 = vxpose.xlu0.b32.start [1/16] %v251, 128
        %418 = vxpose.xlu0.b32.cont [2/16] 0.0, 128
        %419 = vxpose.xlu0.b32.cont [3/16] 0.0, 128
        %420 = vxpose.xlu0.b32.cont [4/16] 0.0, 128
        %421 = vxpose.xlu0.b32.cont [5/16] 0.0, 128
        %422 = vxpose.xlu0.b32.cont [6/16] 0.0, 128
        %423 = vxpose.xlu0.b32.cont [7/16] 0.0, 128
        %424 = vxpose.xlu0.b32.cont [8/16] 0.0, 128
        %425 = vxpose.xlu0.b32.cont [9/16] 0.0, 128
        %426 = vxpose.xlu0.b32.cont [10/16] 0.0, 128
        %427 = vxpose.xlu0.b32.cont [11/16] 0.0, 128
        %428 = vxpose.xlu0.b32.cont [12/16] 0.0, 128
        %429 = vxpose.xlu0.b32.cont [13/16] 0.0, 128
        %430 = vxpose.xlu0.b32.cont [14/16] 0.0, 128
        %431 = vxpose.xlu0.b32.cont [15/16] 0.0, 128
        %432 = vxpose.xlu0.b32.end [16/16] 0.0, 128
        %v433 = vpop.trf.xlu0
        %v434 = vpop.trf.xlu0
        %v435 = vpop.trf.xlu0
        %v436 = vpop.trf.xlu0
        %v437 = vpop.trf.xlu0
        %v438 = vpop.trf.xlu0
        %v439 = vpop.trf.xlu0
        %v440 = vpop.trf.xlu0
        %v441 = vpop.trf.xlu0
        %v442 = vpop.trf.xlu0
        %v443 = vpop.trf.xlu0
        %v444 = vpop.trf.xlu0
        %v445 = vpop.trf.xlu0
        %v446 = vpop.trf.xlu0
        %v447 = vpop.trf.xlu0
        %v448 = vpop.trf.xlu0
        %449 = vxpose.xlu0.b32.start [1/16] %v252, 128
        %450 = vxpose.xlu0.b32.cont [2/16] 0.0, 128
        %451 = vxpose.xlu0.b32.cont [3/16] 0.0, 128
        %452 = vxpose.xlu0.b32.cont [4/16] 0.0, 128
        %453 = vxpose.xlu0.b32.cont [5/16] 0.0, 128
        %454 = vxpose.xlu0.b32.cont [6/16] 0.0, 128
        %455 = vxpose.xlu0.b32.cont [7/16] 0.0, 128
        %456 = vxpose.xlu0.b32.cont [8/16] 0.0, 128
        %457 = vxpose.xlu0.b32.cont [9/16] 0.0, 128
        %458 = vxpose.xlu0.b32.cont [10/16] 0.0, 128
        %459 = vxpose.xlu0.b32.cont [11/16] 0.0, 128
        %460 = vxpose.xlu0.b32.cont [12/16] 0.0, 128
        %461 = vxpose.xlu0.b32.cont [13/16] 0.0, 128
        %462 = vxpose.xlu0.b32.cont [14/16] 0.0, 128
        %463 = vxpose.xlu0.b32.cont [15/16] 0.0, 128
        %464 = vxpose.xlu0.b32.end [16/16] 0.0, 128
        %v465 = vpop.trf.xlu0
        %v466 = vpop.trf.xlu0
        %v467 = vpop.trf.xlu0
        %v468 = vpop.trf.xlu0
        %v469 = vpop.trf.xlu0
        %v470 = vpop.trf.xlu0
        %v471 = vpop.trf.xlu0
        %v472 = vpop.trf.xlu0
        %v473 = vpop.trf.xlu0
        %v474 = vpop.trf.xlu0
        %v475 = vpop.trf.xlu0
        %v476 = vpop.trf.xlu0
        %v477 = vpop.trf.xlu0
        %v478 = vpop.trf.xlu0
        %v479 = vpop.trf.xlu0
        %v480 = vpop.trf.xlu0
        %481 = vxpose.xlu0.b32.start [1/16] %v253, 128
        %482 = vxpose.xlu0.b32.cont [2/16] 0.0, 128
        %483 = vxpose.xlu0.b32.cont [3/16] 0.0, 128
        %484 = vxpose.xlu0.b32.cont [4/16] 0.0, 128
        %485 = vxpose.xlu0.b32.cont [5/16] 0.0, 128
        %486 = vxpose.xlu0.b32.cont [6/16] 0.0, 128
        %487 = vxpose.xlu0.b32.cont [7/16] 0.0, 128
        %488 = vxpose.xlu0.b32.cont [8/16] 0.0, 128
        %489 = vxpose.xlu0.b32.cont [9/16] 0.0, 128
        %490 = vxpose.xlu0.b32.cont [10/16] 0.0, 128
        %491 = vxpose.xlu0.b32.cont [11/16] 0.0, 128
        %492 = vxpose.xlu0.b32.cont [12/16] 0.0, 128
        %493 = vxpose.xlu0.b32.cont [13/16] 0.0, 128
        %494 = vxpose.xlu0.b32.cont [14/16] 0.0, 128
        %495 = vxpose.xlu0.b32.cont [15/16] 0.0, 128
        %496 = vxpose.xlu0.b32.end [16/16] 0.0, 128
        %v497 = vpop.trf.xlu0
        %v498 = vpop.trf.xlu0
        %v499 = vpop.trf.xlu0
        %v500 = vpop.trf.xlu0
        %v501 = vpop.trf.xlu0
        %v502 = vpop.trf.xlu0
        %v503 = vpop.trf.xlu0
        %v504 = vpop.trf.xlu0
        %v505 = vpop.trf.xlu0
        %v506 = vpop.trf.xlu0
        %v507 = vpop.trf.xlu0
        %v508 = vpop.trf.xlu0
        %v509 = vpop.trf.xlu0
        %v510 = vpop.trf.xlu0
        %v511 = vpop.trf.xlu0
        %v512 = vpop.trf.xlu0
        %vm513 = vcmask 64512
        %v515 = vsel %vm513, %v273, 0
        %v518 = vsel %vm513, %v305, 0
        %v521 = vsel %vm513, %v337, 0
        %v524 = vsel %vm513, %v369, 0
        %v527 = vsel %vm513, %v401, 0
        %v530 = vsel %vm513, %v433, 0
        %v533 = vsel %vm513, %v465, 0
        %v536 = vsel %vm513, %v497, 0
        %v539 = vsel %vm513, %v254, 0
        %v542 = vsel %vm513, %v255, 0
        %544 = vmatprep.subr.mxu0 0.0
        %545 = vmatpush1.xpose.msra.mxu0 0.0
        %546 = vmatprep.subr.mxu0 0.0
        %547 = vmatpush1.xpose.msra.mxu0 0.0
        %548 = vmatprep.subr.mxu0 0.0
        %549 = vmatpush1.xpose.msra.mxu0 0.0
        %550 = vmatprep.subr.mxu0 0.0
        %551 = vmatpush1.xpose.msra.mxu0 0.0
        %552 = vmatprep.subr.mxu0 0.0
        %553 = vmatpush1.xpose.msra.mxu0 0.0
        %554 = vmatprep.subr.mxu0 0.0
        %555 = vmatpush1.xpose.msra.mxu0 0.0
        %556 = vmatprep.subr.mxu0 0.0
        %557 = vmatpush1.xpose.msra.mxu0 0.0
        %558 = vmatprep.subr.mxu0 0.0
        %559 = vmatpush1.xpose.msra.mxu0 0.0
        %560 = vmatprep.subr.mxu0 0.0
        %561 = vmatpush1.xpose.msra.mxu0 0.0
        %562 = vmatprep.subr.mxu0 0.0
        %563 = vmatpush1.xpose.msra.mxu0 0.0
        %564 = vmatprep.subr.mxu0 0.0
        %565 = vmatpush1.xpose.msra.mxu0 0.0
        %566 = vmatprep.subr.mxu0 0.0
        %567 = vmatpush1.xpose.msra.mxu0 0.0
        %568 = vmatprep.subr.mxu0 0.0
        %569 = vmatpush1.xpose.msra.mxu0 0.0
        %570 = vmatprep.subr.mxu0 0.0
        %571 = vmatpush1.xpose.msra.mxu0 0.0
        %572 = vmatprep.subr.mxu0 0.0
        %573 = vmatpush1.xpose.msra.mxu0 %v542
        %574 = vmatprep.subr.mxu0 0.0
        %575 = vmatpush1.xpose.msra.mxu0 %v539
        %576 = vmatprep.subr.mxu0 0.0
        %577 = vmatpush2.xpose.msra.mxu0 0.0
        %578 = vmatprep.subr.mxu0 0.0
        %579 = vmatpush2.xpose.msra.mxu0 0.0
        %580 = vmatprep.subr.mxu0 0.0
        %581 = vmatpush2.xpose.msra.mxu0 0.0
        %582 = vmatprep.subr.mxu0 0.0
        %583 = vmatpush2.xpose.msra.mxu0 0.0
        %584 = vmatprep.subr.mxu0 0.0
        %585 = vmatpush2.xpose.msra.mxu0 0.0
        %586 = vmatprep.subr.mxu0 0.0
        %587 = vmatpush2.xpose.msra.mxu0 0.0
        %588 = vmatprep.subr.mxu0 0.0
        %589 = vmatpush2.xpose.msra.mxu0 0.0
        %590 = vmatprep.subr.mxu0 0.0
        %591 = vmatpush2.xpose.msra.mxu0 0.0
        %592 = vmatprep.subr.mxu0 0.0
        %593 = vmatpush2.xpose.msra.mxu0 0.0
        %594 = vmatprep.subr.mxu0 0.0
        %595 = vmatpush2.xpose.msra.mxu0 0.0
        %596 = vmatprep.subr.mxu0 0.0
        %597 = vmatpush2.xpose.msra.mxu0 0.0
        %598 = vmatprep.subr.mxu0 0.0
        %599 = vmatpush2.xpose.msra.mxu0 0.0
        %600 = vmatprep.subr.mxu0 0.0
        %601 = vmatpush2.xpose.msra.mxu0 0.0
        %602 = vmatprep.subr.mxu0 0.0
        %603 = vmatpush2.xpose.msra.mxu0 0.0
        %604 = vmatprep.subr.mxu0 0.0
        %605 = vmatpush2.xpose.msra.mxu0 0.0
        %606 = vmatprep.subr.mxu0 0.0
        %607 = vmatpush2.xpose.msra.mxu0 0.0
        %608 = vmatprep.mubr.f32.mxu0 0.0
        %609 = vmatmul.mubr.f32.gmra.mxu0 %v515
        %v610 = vpop.f32.mrf.mxu0
        %v611 = vadd.f32 0.0, %v610
        %v612 = vpop.f32.mrf.mxu0
        %613 = vmatprep.mubr.f32.mxu0 0.0
        %614 = vmatmul.mubr.f32.gmra.mxu0 %v518
        %v615 = vpop.f32.mrf.mxu0
        %v616 = vadd.f32 0.0, %v615
        %v617 = vpop.f32.mrf.mxu0
        %618 = vmatprep.mubr.f32.mxu0 0.0
        %619 = vmatmul.mubr.f32.gmra.mxu0 %v521
        %v620 = vpop.f32.mrf.mxu0
        %v621 = vadd.f32 0.0, %v620
        %v622 = vpop.f32.mrf.mxu0
        %623 = vmatprep.mubr.f32.mxu0 0.0
        %624 = vmatmul.mubr.f32.gmra.mxu0 %v524
        %v625 = vpop.f32.mrf.mxu0
        %v626 = vadd.f32 0.0, %v625
        %v627 = vpop.f32.mrf.mxu0
        %628 = vmatprep.mubr.f32.mxu0 0.0
        %629 = vmatmul.mubr.f32.gmra.mxu0 %v527
        %v630 = vpop.f32.mrf.mxu0
        %v631 = vadd.f32 0.0, %v630
        %v632 = vpop.f32.mrf.mxu0
        %633 = vmatprep.mubr.f32.mxu0 0.0
        %634 = vmatmul.mubr.f32.gmra.mxu0 %v530
        %v635 = vpop.f32.mrf.mxu0
        %v636 = vadd.f32 0.0, %v635
        %v637 = vpop.f32.mrf.mxu0
        %638 = vmatprep.mubr.f32.mxu0 0.0
        %639 = vmatmul.mubr.f32.gmra.mxu0 %v533
        %v640 = vpop.f32.mrf.mxu0
        %v641 = vadd.f32 0.0, %v640
        %v642 = vpop.f32.mrf.mxu0
        %643 = vmatprep.mubr.f32.mxu0 0.0
        %644 = vmatmul.mubr.f32.gmra.mxu0 %v536
        %v645 = vpop.f32.mrf.mxu0
        %v646 = vadd.f32 0.0, %v645
        %v647 = vpop.f32.mrf.mxu0
        %648 = vdwg.mxu0
        %649 = vxpose.xlu0.b32.start [1/16] %v611, 128
        %650 = vxpose.xlu0.b32.cont [2/16] 0.0, 128
        %651 = vxpose.xlu0.b32.cont [3/16] 0.0, 128
        %652 = vxpose.xlu0.b32.cont [4/16] 0.0, 128
        %653 = vxpose.xlu0.b32.cont [5/16] 0.0, 128
        %654 = vxpose.xlu0.b32.cont [6/16] 0.0, 128
        %655 = vxpose.xlu0.b32.cont [7/16] 0.0, 128
        %656 = vxpose.xlu0.b32.cont [8/16] 0.0, 128
        %657 = vxpose.xlu0.b32.cont [9/16] 0.0, 128
        %658 = vxpose.xlu0.b32.cont [10/16] 0.0, 128
        %659 = vxpose.xlu0.b32.cont [11/16] 0.0, 128
        %660 = vxpose.xlu0.b32.cont [12/16] 0.0, 128
        %661 = vxpose.xlu0.b32.cont [13/16] 0.0, 128
        %662 = vxpose.xlu0.b32.cont [14/16] 0.0, 128
        %663 = vxpose.xlu0.b32.cont [15/16] 0.0, 128
        %664 = vxpose.xlu0.b32.end [16/16] 0.0, 128
        %v665 = vpop.trf.xlu0
        %v666 = vpop.trf.xlu0
        %v667 = vpop.trf.xlu0
        %v668 = vpop.trf.xlu0
        %v669 = vpop.trf.xlu0
        %v670 = vpop.trf.xlu0
        %v671 = vpop.trf.xlu0
        %v672 = vpop.trf.xlu0
        %v673 = vpop.trf.xlu0
        %v674 = vpop.trf.xlu0
        %v675 = vpop.trf.xlu0
        %v676 = vpop.trf.xlu0
        %v677 = vpop.trf.xlu0
        %v678 = vpop.trf.xlu0
        %v679 = vpop.trf.xlu0
        %v680 = vpop.trf.xlu0
        %681 = vxpose.xlu0.b32.start [1/16] %v616, 128
        %682 = vxpose.xlu0.b32.cont [2/16] 0.0, 128
        %683 = vxpose.xlu0.b32.cont [3/16] 0.0, 128
        %684 = vxpose.xlu0.b32.cont [4/16] 0.0, 128
        %685 = vxpose.xlu0.b32.cont [5/16] 0.0, 128
        %686 = vxpose.xlu0.b32.cont [6/16] 0.0, 128
        %687 = vxpose.xlu0.b32.cont [7/16] 0.0, 128
        %688 = vxpose.xlu0.b32.cont [8/16] 0.0, 128
        %689 = vxpose.xlu0.b32.cont [9/16] 0.0, 128
        %690 = vxpose.xlu0.b32.cont [10/16] 0.0, 128
        %691 = vxpose.xlu0.b32.cont [11/16] 0.0, 128
        %692 = vxpose.xlu0.b32.cont [12/16] 0.0, 128
        %693 = vxpose.xlu0.b32.cont [13/16] 0.0, 128
        %694 = vxpose.xlu0.b32.cont [14/16] 0.0, 128
        %695 = vxpose.xlu0.b32.cont [15/16] 0.0, 128
        %696 = vxpose.xlu0.b32.end [16/16] 0.0, 128
        %v697 = vpop.trf.xlu0
        %v698 = vpop.trf.xlu0
        %v699 = vpop.trf.xlu0
        %v700 = vpop.trf.xlu0
        %v701 = vpop.trf.xlu0
        %v702 = vpop.trf.xlu0
        %v703 = vpop.trf.xlu0
        %v704 = vpop.trf.xlu0
        %v705 = vpop.trf.xlu0
        %v706 = vpop.trf.xlu0
        %v707 = vpop.trf.xlu0
        %v708 = vpop.trf.xlu0
        %v709 = vpop.trf.xlu0
        %v710 = vpop.trf.xlu0
        %v711 = vpop.trf.xlu0
        %v712 = vpop.trf.xlu0
        %713 = vxpose.xlu0.b32.start [1/16] %v621, 128
        %714 = vxpose.xlu0.b32.cont [2/16] 0.0, 128
        %715 = vxpose.xlu0.b32.cont [3/16] 0.0, 128
        %716 = vxpose.xlu0.b32.cont [4/16] 0.0, 128
        %717 = vxpose.xlu0.b32.cont [5/16] 0.0, 128
        %718 = vxpose.xlu0.b32.cont [6/16] 0.0, 128
        %719 = vxpose.xlu0.b32.cont [7/16] 0.0, 128
        %720 = vxpose.xlu0.b32.cont [8/16] 0.0, 128
        %721 = vxpose.xlu0.b32.cont [9/16] 0.0, 128
        %722 = vxpose.xlu0.b32.cont [10/16] 0.0, 128
        %723 = vxpose.xlu0.b32.cont [11/16] 0.0, 128
        %724 = vxpose.xlu0.b32.cont [12/16] 0.0, 128
        %725 = vxpose.xlu0.b32.cont [13/16] 0.0, 128
        %726 = vxpose.xlu0.b32.cont [14/16] 0.0, 128
        %727 = vxpose.xlu0.b32.cont [15/16] 0.0, 128
        %728 = vxpose.xlu0.b32.end [16/16] 0.0, 128
        %v729 = vpop.trf.xlu0
        %v730 = vpop.trf.xlu0
        %v731 = vpop.trf.xlu0
        %v732 = vpop.trf.xlu0
        %v733 = vpop.trf.xlu0
        %v734 = vpop.trf.xlu0
        %v735 = vpop.trf.xlu0
        %v736 = vpop.trf.xlu0
        %v737 = vpop.trf.xlu0
        %v738 = vpop.trf.xlu0
        %v739 = vpop.trf.xlu0
        %v740 = vpop.trf.xlu0
        %v741 = vpop.trf.xlu0
        %v742 = vpop.trf.xlu0
        %v743 = vpop.trf.xlu0
        %v744 = vpop.trf.xlu0
        %745 = vxpose.xlu0.b32.start [1/16] %v626, 128
        %746 = vxpose.xlu0.b32.cont [2/16] 0.0, 128
        %747 = vxpose.xlu0.b32.cont [3/16] 0.0, 128
        %748 = vxpose.xlu0.b32.cont [4/16] 0.0, 128
        %749 = vxpose.xlu0.b32.cont [5/16] 0.0, 128
        %750 = vxpose.xlu0.b32.cont [6/16] 0.0, 128
        %751 = vxpose.xlu0.b32.cont [7/16] 0.0, 128
        %752 = vxpose.xlu0.b32.cont [8/16] 0.0, 128
        %753 = vxpose.xlu0.b32.cont [9/16] 0.0, 128
        %754 = vxpose.xlu0.b32.cont [10/16] 0.0, 128
        %755 = vxpose.xlu0.b32.cont [11/16] 0.0, 128
        %756 = vxpose.xlu0.b32.cont [12/16] 0.0, 128
        %757 = vxpose.xlu0.b32.cont [13/16] 0.0, 128
        %758 = vxpose.xlu0.b32.cont [14/16] 0.0, 128
        %759 = vxpose.xlu0.b32.cont [15/16] 0.0, 128
        %760 = vxpose.xlu0.b32.end [16/16] 0.0, 128
        %v761 = vpop.trf.xlu0
        %v762 = vpop.trf.xlu0
        %v763 = vpop.trf.xlu0
        %v764 = vpop.trf.xlu0
        %v765 = vpop.trf.xlu0
        %v766 = vpop.trf.xlu0
        %v767 = vpop.trf.xlu0
        %v768 = vpop.trf.xlu0
        %v769 = vpop.trf.xlu0
        %v770 = vpop.trf.xlu0
        %v771 = vpop.trf.xlu0
        %v772 = vpop.trf.xlu0
        %v773 = vpop.trf.xlu0
        %v774 = vpop.trf.xlu0
        %v775 = vpop.trf.xlu0
        %v776 = vpop.trf.xlu0
        %777 = vxpose.xlu0.b32.start [1/16] %v631, 128
        %778 = vxpose.xlu0.b32.cont [2/16] 0.0, 128
        %779 = vxpose.xlu0.b32.cont [3/16] 0.0, 128
        %780 = vxpose.xlu0.b32.cont [4/16] 0.0, 128
        %781 = vxpose.xlu0.b32.cont [5/16] 0.0, 128
        %782 = vxpose.xlu0.b32.cont [6/16] 0.0, 128
        %783 = vxpose.xlu0.b32.cont [7/16] 0.0, 128
        %784 = vxpose.xlu0.b32.cont [8/16] 0.0, 128
        %785 = vxpose.xlu0.b32.cont [9/16] 0.0, 128
        %786 = vxpose.xlu0.b32.cont [10/16] 0.0, 128
        %787 = vxpose.xlu0.b32.cont [11/16] 0.0, 128
        %788 = vxpose.xlu0.b32.cont [12/16] 0.0, 128
        %789 = vxpose.xlu0.b32.cont [13/16] 0.0, 128
        %790 = vxpose.xlu0.b32.cont [14/16] 0.0, 128
        %791 = vxpose.xlu0.b32.cont [15/16] 0.0, 128
        %792 = vxpose.xlu0.b32.end [16/16] 0.0, 128
        %v793 = vpop.trf.xlu0
        %v794 = vpop.trf.xlu0
        %v795 = vpop.trf.xlu0
        %v796 = vpop.trf.xlu0
        %v797 = vpop.trf.xlu0
        %v798 = vpop.trf.xlu0
        %v799 = vpop.trf.xlu0
        %v800 = vpop.trf.xlu0
        %v801 = vpop.trf.xlu0
        %v802 = vpop.trf.xlu0
        %v803 = vpop.trf.xlu0
        %v804 = vpop.trf.xlu0
        %v805 = vpop.trf.xlu0
        %v806 = vpop.trf.xlu0
        %v807 = vpop.trf.xlu0
        %v808 = vpop.trf.xlu0
        %809 = vxpose.xlu0.b32.start [1/16] %v636, 128
        %810 = vxpose.xlu0.b32.cont [2/16] 0.0, 128
        %811 = vxpose.xlu0.b32.cont [3/16] 0.0, 128
        %812 = vxpose.xlu0.b32.cont [4/16] 0.0, 128
        %813 = vxpose.xlu0.b32.cont [5/16] 0.0, 128
        %814 = vxpose.xlu0.b32.cont [6/16] 0.0, 128
        %815 = vxpose.xlu0.b32.cont [7/16] 0.0, 128
        %816 = vxpose.xlu0.b32.cont [8/16] 0.0, 128
        %817 = vxpose.xlu0.b32.cont [9/16] 0.0, 128
        %818 = vxpose.xlu0.b32.cont [10/16] 0.0, 128
        %819 = vxpose.xlu0.b32.cont [11/16] 0.0, 128
        %820 = vxpose.xlu0.b32.cont [12/16] 0.0, 128
        %821 = vxpose.xlu0.b32.cont [13/16] 0.0, 128
        %822 = vxpose.xlu0.b32.cont [14/16] 0.0, 128
        %823 = vxpose.xlu0.b32.cont [15/16] 0.0, 128
        %824 = vxpose.xlu0.b32.end [16/16] 0.0, 128
        %v825 = vpop.trf.xlu0
        %v826 = vpop.trf.xlu0
        %v827 = vpop.trf.xlu0
        %v828 = vpop.trf.xlu0
        %v829 = vpop.trf.xlu0
        %v830 = vpop.trf.xlu0
        %v831 = vpop.trf.xlu0
        %v832 = vpop.trf.xlu0
        %v833 = vpop.trf.xlu0
        %v834 = vpop.trf.xlu0
        %v835 = vpop.trf.xlu0
        %v836 = vpop.trf.xlu0
        %v837 = vpop.trf.xlu0
        %v838 = vpop.trf.xlu0
        %v839 = vpop.trf.xlu0
        %v840 = vpop.trf.xlu0
        %841 = vxpose.xlu0.b32.start [1/16] %v641, 128
        %842 = vxpose.xlu0.b32.cont [2/16] 0.0, 128
        %843 = vxpose.xlu0.b32.cont [3/16] 0.0, 128
        %844 = vxpose.xlu0.b32.cont [4/16] 0.0, 128
        %845 = vxpose.xlu0.b32.cont [5/16] 0.0, 128
        %846 = vxpose.xlu0.b32.cont [6/16] 0.0, 128
        %847 = vxpose.xlu0.b32.cont [7/16] 0.0, 128
        %848 = vxpose.xlu0.b32.cont [8/16] 0.0, 128
        %849 = vxpose.xlu0.b32.cont [9/16] 0.0, 128
        %850 = vxpose.xlu0.b32.cont [10/16] 0.0, 128
        %851 = vxpose.xlu0.b32.cont [11/16] 0.0, 128
        %852 = vxpose.xlu0.b32.cont [12/16] 0.0, 128
        %853 = vxpose.xlu0.b32.cont [13/16] 0.0, 128
        %854 = vxpose.xlu0.b32.cont [14/16] 0.0, 128
        %855 = vxpose.xlu0.b32.cont [15/16] 0.0, 128
        %856 = vxpose.xlu0.b32.end [16/16] 0.0, 128
        %v857 = vpop.trf.xlu0
        %v858 = vpop.trf.xlu0
        %v859 = vpop.trf.xlu0
        %v860 = vpop.trf.xlu0
        %v861 = vpop.trf.xlu0
        %v862 = vpop.trf.xlu0
        %v863 = vpop.trf.xlu0
        %v864 = vpop.trf.xlu0
        %v865 = vpop.trf.xlu0
        %v866 = vpop.trf.xlu0
        %v867 = vpop.trf.xlu0
        %v868 = vpop.trf.xlu0
        %v869 = vpop.trf.xlu0
        %v870 = vpop.trf.xlu0
        %v871 = vpop.trf.xlu0
        %v872 = vpop.trf.xlu0
        %873 = vxpose.xlu0.b32.start [1/16] %v646, 128
        %874 = vxpose.xlu0.b32.cont [2/16] 0.0, 128
        %875 = vxpose.xlu0.b32.cont [3/16] 0.0, 128
        %876 = vxpose.xlu0.b32.cont [4/16] 0.0, 128
        %877 = vxpose.xlu0.b32.cont [5/16] 0.0, 128
        %878 = vxpose.xlu0.b32.cont [6/16] 0.0, 128
        %879 = vxpose.xlu0.b32.cont [7/16] 0.0, 128
        %880 = vxpose.xlu0.b32.cont [8/16] 0.0, 128
        %881 = vxpose.xlu0.b32.cont [9/16] 0.0, 128
        %882 = vxpose.xlu0.b32.cont [10/16] 0.0, 128
        %883 = vxpose.xlu0.b32.cont [11/16] 0.0, 128
        %884 = vxpose.xlu0.b32.cont [12/16] 0.0, 128
        %885 = vxpose.xlu0.b32.cont [13/16] 0.0, 128
        %886 = vxpose.xlu0.b32.cont [14/16] 0.0, 128
        %887 = vxpose.xlu0.b32.cont [15/16] 0.0, 128
        %888 = vxpose.xlu0.b32.end [16/16] 0.0, 128
        %v889 = vpop.trf.xlu0
        %v890 = vpop.trf.xlu0
        %v891 = vpop.trf.xlu0
        %v892 = vpop.trf.xlu0
        %v893 = vpop.trf.xlu0
        %v894 = vpop.trf.xlu0
        %v895 = vpop.trf.xlu0
        %v896 = vpop.trf.xlu0
        %v897 = vpop.trf.xlu0
        %v898 = vpop.trf.xlu0
        %v899 = vpop.trf.xlu0
        %v900 = vpop.trf.xlu0
        %v901 = vpop.trf.xlu0
        %v902 = vpop.trf.xlu0
        %v903 = vpop.trf.xlu0
        %v904 = vpop.trf.xlu0
        %v906 = vsel %vm513, %v665, 0
        %v909 = vsel %vm513, %v666, 0
        %v912 = vsel %vm513, %v697, 0
        %v915 = vsel %vm513, %v698, 0
        %v918 = vsel %vm513, %v729, 0
        %v921 = vsel %vm513, %v730, 0
        %v924 = vsel %vm513, %v761, 0
        %v927 = vsel %vm513, %v762, 0
        %v930 = vsel %vm513, %v793, 0
        %v933 = vsel %vm513, %v794, 0
        %v936 = vsel %vm513, %v825, 0
        %v939 = vsel %vm513, %v826, 0
        %v942 = vsel %vm513, %v857, 0
        %v945 = vsel %vm513, %v858, 0
        %v948 = vsel %vm513, %v889, 0
        %v951 = vsel %vm513, %v890, 0
        %953 = vmatprep.subr.mxu0 0.0
        %954 = vmatpush1.msra.mxu0 0.0
        %955 = vmatprep.subr.mxu0 0.0
        %956 = vmatpush1.msra.mxu0 0.0
        %957 = vmatprep.subr.mxu0 0.0
        %958 = vmatpush1.msra.mxu0 0.0
        %959 = vmatprep.subr.mxu0 0.0
        %960 = vmatpush1.msra.mxu0 0.0
        %961 = vmatprep.subr.mxu0 0.0
        %962 = vmatpush1.msra.mxu0 0.0
        %963 = vmatprep.subr.mxu0 0.0
        %964 = vmatpush1.msra.mxu0 0.0
        %965 = vmatprep.subr.mxu0 0.0
        %966 = vmatpush1.msra.mxu0 0.0
        %967 = vmatprep.subr.mxu0 0.0
        %968 = vmatpush1.msra.mxu0 0.0
        %969 = vmatprep.subr.mxu0 0.0
        %970 = vmatpush1.msra.mxu0 0.0
        %971 = vmatprep.subr.mxu0 0.0
        %972 = vmatpush1.msra.mxu0 0.0
        %973 = vmatprep.subr.mxu0 0.0
        %974 = vmatpush1.msra.mxu0 0.0
        %975 = vmatprep.subr.mxu0 0.0
        %976 = vmatpush1.msra.mxu0 0.0
        %977 = vmatprep.subr.mxu0 0.0
        %978 = vmatpush1.msra.mxu0 0.0
        %979 = vmatprep.subr.mxu0 0.0
        %980 = vmatpush1.msra.mxu0 0.0
        %981 = vmatprep.subr.mxu0 0.0
        %982 = vmatpush1.msra.mxu0 0.0
        %983 = vmatprep.subr.mxu0 0.0
        %984 = vmatpush1.msra.mxu0 %v256
        %985 = vmatprep.subr.mxu0 0.0
        %986 = vmatpush2.msra.mxu0 0.0
        %987 = vmatprep.subr.mxu0 0.0
        %988 = vmatpush2.msra.mxu0 0.0
        %989 = vmatprep.subr.mxu0 0.0
        %990 = vmatpush2.msra.mxu0 0.0
        %991 = vmatprep.subr.mxu0 0.0
        %992 = vmatpush2.msra.mxu0 0.0
        %993 = vmatprep.subr.mxu0 0.0
        %994 = vmatpush2.msra.mxu0 0.0
        %995 = vmatprep.subr.mxu0 0.0
        %996 = vmatpush2.msra.mxu0 0.0
        %997 = vmatprep.subr.mxu0 0.0
        %998 = vmatpush2.msra.mxu0 0.0
        %999 = vmatprep.subr.mxu0 0.0
        %1000 = vmatpush2.msra.mxu0 0.0
        %1001 = vmatprep.subr.mxu0 0.0
        %1002 = vmatpush2.msra.mxu0 0.0
        %1003 = vmatprep.subr.mxu0 0.0
        %1004 = vmatpush2.msra.mxu0 0.0
        %1005 = vmatprep.subr.mxu0 0.0
        %1006 = vmatpush2.msra.mxu0 0.0
        %1007 = vmatprep.subr.mxu0 0.0
        %1008 = vmatpush2.msra.mxu0 0.0
        %1009 = vmatprep.subr.mxu0 0.0
        %1010 = vmatpush2.msra.mxu0 0.0
        %1011 = vmatprep.subr.mxu0 0.0
        %1012 = vmatpush2.msra.mxu0 0.0
        %1013 = vmatprep.subr.mxu0 0.0
        %1014 = vmatpush2.msra.mxu0 0.0
        %1015 = vmatprep.subr.mxu0 0.0
        %1016 = vmatpush2.msra.mxu0 0.0
        %1017 = vmatprep.mubr.f32.mxu0 0.0
        %1018 = vmatmul.mubr.f32.gmra.mxu0 %v906
        %v1019 = vpop.f32.mrf.mxu0
        %v1020 = vadd.f32 0.0, %v1019
        %v1021 = vpop.f32.mrf.mxu0
        %1022 = vmatprep.mubr.f32.mxu0 0.0
        %1023 = vmatmul.mubr.f32.gmra.mxu0 %v909
        %v1024 = vpop.f32.mrf.mxu0
        %v1025 = vadd.f32 0.0, %v1024
        %v1026 = vpop.f32.mrf.mxu0
        %1027 = vmatprep.mubr.f32.mxu0 0.0
        %1028 = vmatmul.mubr.f32.gmra.mxu0 %v912
        %v1029 = vpop.f32.mrf.mxu0
        %v1030 = vadd.f32 0.0, %v1029
        %v1031 = vpop.f32.mrf.mxu0
        %1032 = vmatprep.mubr.f32.mxu0 0.0
        %1033 = vmatmul.mubr.f32.gmra.mxu0 %v915
        %v1034 = vpop.f32.mrf.mxu0
        %v1035 = vadd.f32 0.0, %v1034
        %v1036 = vpop.f32.mrf.mxu0
        %1037 = vmatprep.mubr.f32.mxu0 0.0
        %1038 = vmatmul.mubr.f32.gmra.mxu0 %v918
        %v1039 = vpop.f32.mrf.mxu0
        %v1040 = vadd.f32 0.0, %v1039
        %v1041 = vpop.f32.mrf.mxu0
        %1042 = vmatprep.mubr.f32.mxu0 0.0
        %1043 = vmatmul.mubr.f32.gmra.mxu0 %v921
        %v1044 = vpop.f32.mrf.mxu0
        %v1045 = vadd.f32 0.0, %v1044
        %v1046 = vpop.f32.mrf.mxu0
        %1047 = vmatprep.mubr.f32.mxu0 0.0
        %1048 = vmatmul.mubr.f32.gmra.mxu0 %v924
        %v1049 = vpop.f32.mrf.mxu0
        %v1050 = vadd.f32 0.0, %v1049
        %v1051 = vpop.f32.mrf.mxu0
        %1052 = vmatprep.mubr.f32.mxu0 0.0
        %1053 = vmatmul.mubr.f32.gmra.mxu0 %v927
        %v1054 = vpop.f32.mrf.mxu0
        %v1055 = vadd.f32 0.0, %v1054
        %v1056 = vpop.f32.mrf.mxu0
        %1057 = vmatprep.mubr.f32.mxu0 0.0
        %1058 = vmatmul.mubr.f32.gmra.mxu0 %v930
        %v1059 = vpop.f32.mrf.mxu0
        %v1060 = vadd.f32 0.0, %v1059
        %v1061 = vpop.f32.mrf.mxu0
        %1062 = vmatprep.mubr.f32.mxu0 0.0
        %1063 = vmatmul.mubr.f32.gmra.mxu0 %v933
        %v1064 = vpop.f32.mrf.mxu0
        %v1065 = vadd.f32 0.0, %v1064
        %v1066 = vpop.f32.mrf.mxu0
        %1067 = vmatprep.mubr.f32.mxu0 0.0
        %1068 = vmatmul.mubr.f32.gmra.mxu0 %v936
        %v1069 = vpop.f32.mrf.mxu0
        %v1070 = vadd.f32 0.0, %v1069
        %v1071 = vpop.f32.mrf.mxu0
        %1072 = vmatprep.mubr.f32.mxu0 0.0
        %1073 = vmatmul.mubr.f32.gmra.mxu0 %v939
        %v1074 = vpop.f32.mrf.mxu0
        %v1075 = vadd.f32 0.0, %v1074
        %v1076 = vpop.f32.mrf.mxu0
        %1077 = vmatprep.mubr.f32.mxu0 0.0
        %1078 = vmatmul.mubr.f32.gmra.mxu0 %v942
        %v1079 = vpop.f32.mrf.mxu0
        %v1080 = vadd.f32 0.0, %v1079
        %v1081 = vpop.f32.mrf.mxu0
        %1082 = vmatprep.mubr.f32.mxu0 0.0
        %1083 = vmatmul.mubr.f32.gmra.mxu0 %v945
        %v1084 = vpop.f32.mrf.mxu0
        %v1085 = vadd.f32 0.0, %v1084
        %v1086 = vpop.f32.mrf.mxu0
        %1087 = vmatprep.mubr.f32.mxu0 0.0
        %1088 = vmatmul.mubr.f32.gmra.mxu0 %v948
        %v1089 = vpop.f32.mrf.mxu0
        %v1090 = vadd.f32 0.0, %v1089
        %v1091 = vpop.f32.mrf.mxu0
        %1092 = vmatprep.mubr.f32.mxu0 0.0
        %1093 = vmatmul.mubr.f32.gmra.mxu0 %v951
        %v1094 = vpop.f32.mrf.mxu0
        %v1095 = vadd.f32 0.0, %v1094
        %v1096 = vpop.f32.mrf.mxu0
        %1097 = vdwg.mxu0
        %vm1098 = vcmask 130048
        %1099 = vst.msk [vmem:[%s244] sm:$0xff] %vm1098, %v1020
        %1100 = vst.msk [vmem:[%s244 + $0x8] sm:$0xff] %vm1098, %v1025
        %1101 = vst.msk [vmem:[%s244 + $0x10] sm:$0xff] %vm1098, %v1030
        %1102 = vst.msk [vmem:[%s244 + $0x18] sm:$0xff] %vm1098, %v1035
        %1103 = vst.msk [vmem:[%s244 + $0x20] sm:$0xff] %vm1098, %v1040
        %1104 = vst.msk [vmem:[%s244 + $0x28] sm:$0xff] %vm1098, %v1045
        %1105 = vst.msk [vmem:[%s244 + $0x30] sm:$0xff] %vm1098, %v1050
        %1106 = vst.msk [vmem:[%s244 + $0x38] sm:$0xff] %vm1098, %v1055
        %1107 = vst.msk [vmem:[%s244 + $0x40] sm:$0xff] %vm1098, %v1060
        %1108 = vst.msk [vmem:[%s244 + $0x48] sm:$0xff] %vm1098, %v1065
        %1109 = vst.msk [vmem:[%s244 + $0x50] sm:$0xff] %vm1098, %v1070
        %1110 = vst.msk [vmem:[%s244 + $0x58] sm:$0xff] %vm1098, %v1075
        %1111 = vst.msk [vmem:[%s244 + $0x60] sm:$0xff] %vm1098, %v1080
        %1112 = vst.msk [vmem:[%s244 + $0x68] sm:$0xff] %vm1098, %v1085
        %1113 = vst.msk [vmem:[%s244 + $0x70] sm:$0xff] %vm1098, %v1090
        %1114 = vst.msk [vmem:[%s244 + $0x78] sm:$0xff] %vm1098, %v1095
        %s1115 = smul.u32 8, %s21
        %p1116 = scmp.lt.s32.totalorder %s20, 1
        %s1117 = scalar_select %p1116, %s20, 1
        %p1118 = scmp.lt.s32.totalorder %s1115, 7
        %s1119 = scalar_select %p1118, %s1115, 7
        %s1120 = smul.addr %s1119, 2
        %s1121 = smul.addr %s1117, 16
        %s1122 = sadd.s32 %s1120, %s1121
        %s1123 = smul.addr %s1122, 8
        %s1124 = scalar_lea.vmem %s3, %s1123
        // Predicated region
        $region45: #{transition_up.1} parent=31 // pred_check
          %p1125 = pneg %p118
        $region46: #{transition_up.1} parent=31 // pred_check_branch
          %1127 = sbr.rel (%p1125) target = $region48
        $region47: #{transition_up.1} parent=31 // pred_region
          %s1128 = smul.u32 8, %s21
        $region48: #{transition_up.1} parent=31 // pred_fallthru
          _
      $region32: #{transition_up.1} parent=5 // pred_fallthru
        _
      %p1129 = scmp.le.s32.totalorder 2, %s11
      // Predicated region
      $region49: #{transition_up.1} parent=5 // pred_check
        %p1130 = pneg %p1129
      $region50: #{transition_up.1} parent=5 // pred_check_branch
        %1132 = sbr.rel (%p1130) target = $region52
      $region51: #{transition_up.1} parent=5 // pred_region
        %s1133 = ssub.s32 %s11, 2
        // Predicated region
        $region53: #{transition_up.1} parent=51 // pred_check
          %p1134 = pneg %p124
        $region54: #{transition_up.1} parent=51 // pred_check_branch
          %1136 = sbr.rel (%p1134) target = $region56
        $region55: #{transition_up.1} parent=51 // pred_region
          %s1137 = smul.u32 8, %s23
          %p1138 = scmp.lt.s32.totalorder %s22, 1
          %s1139 = scalar_select %p1138, %s22, 1
          %p1140 = scmp.lt.s32.totalorder %s1137, 7
          %s1141 = scalar_select %p1140, %s1137, 7
          %s1142 = smul.addr %s1141, 2
          %s1143 = smul.addr %s1139, 16
          %s1144 = sadd.s32 %s1142, %s1143
          %s1145 = smul.addr %s1144, 8
          %s1146 = scalar_lea.vmem %s3, %s1145
        $region56: #{transition_up.1} parent=51 // pred_fallthru
          _
      $region52: #{transition_up.1} parent=5 // pred_fallthru
        _
    $region6: #{transition_up.1} parent=1 // loop_footer
      %s15 = sadd.s32 1, %s11
    $region7: #{transition_up.1} parent=1 // loop_footer_branch
      %10 = sbr.rel target = $region3
    $region8: #{transition_up.1} parent=1 // loop_exit
      _
    %1147 = vsyncpa [#allocation3], 1
    %s1148 = scalar_lea.sflag [#allocation3], 1
    %1149 = vsyncpa %s1148, 1
    %1150 = vsyncpa [#allocation5], 1

</llo_original>
